<compile_context>
chip_gen: v6e
topology: v6e:2x2x1
jax: 0.10.0
libtpu: 0.0.40
codegen_flags: <defaults>
</compile_context>

<pallas_src>
import functools

import jax
import jax.numpy as jnp
from jax.experimental import pallas as pl
from jax.experimental.pallas import tpu as pltpu


def _pick_row_tile(Ho, Wo):
    """Output-row tile: divides Ho, keeps the output block's minor dim (TH*Wo)
    a multiple of 128 (lane-dense stores) and leaves >1 tile for pipeline
    depth. Falls back to the full height (single tile)."""
    for th in (8, 16, 32, 4, 2):
        if Ho % th == 0 and th < Ho and (th * Wo) % 128 == 0:
            return th
    return Ho


def _conv3x3_kernel(*args, TH, TH_in, Wo, Cin, Cout, stride):
    """One (batch, row-tile) grid step.

    args = (x_plane_0 .. x_plane_{stride-1}, w, b, out):
      x_plane_p : (1, Hp, Wp_p, Cin)  column-parity plane p of the padded input
      w         : (Cout, 9*Cin)       weights, K axis ordered (kh, kw, cin)
      b         : (Cout, 1)           bias
      out       : (1, Cout, TH*Wo)    transposed output tile (lane-dense store)
    """
    *x_refs, w_ref, b_ref, o_ref = args
    r = pl.program_id(1)
    row0 = pl.multiple_of(r * (TH * stride), TH * stride)

    # One contiguous row-window load per column-parity plane (major-dim pl.ds),
    # instead of materializing the whole padded image in vregs.
    windows = [x_refs[p][0, pl.ds(row0, TH_in), :, :] for p in range(stride)]

    # im2col: gather the 9 taps (each (TH, Wo, Cin)) and fuse them along the
    # channel axis -> a single K = 9*Cin contraction on the MXU.
    taps = []
    for kh in range(3):
        for kw in range(3):
            xw = windows[kw % stride]          # plane holding cols kw, kw+stride, ...
            a = xw[kh:kh + stride * TH]        # rows kh .. kh+stride*TH-1 (contiguous)
            if stride > 1:
                # keep rows kh, kh+stride, ... via a major-dim reshape (layout-safe;
                # last two dims untouched) instead of a strided vector slice.
                a = a.reshape(TH, stride, a.shape[1], Cin)[:, 0]
            q = kw // stride
            taps.append(a[:, q:q + Wo, :])     # (TH, Wo, Cin)
    patch = jnp.concatenate(taps, axis=-1).reshape(TH * Wo, 9 * Cin)

    # (Cout, 9*Cin) x (TH*Wo, 9*Cin)^T -> (Cout, TH*Wo): transposed result so the
    # store's minor dim is TH*Wo (>=128 lanes) rather than a small Cout.
    acc = jax.lax.dot_general(
        w_ref[...], patch,
        dimension_numbers=(((1,), (1,)), ((), ())),
        preferred_element_type=jnp.float32)
    acc = acc + b_ref[...].astype(jnp.float32)          # (Cout, 1) broadcast
    o_ref[...] = acc.reshape(1, Cout, TH * Wo).astype(o_ref.dtype)


def conv2d3x3(x_nchw, weight_oihw, bias, *, downsample=False):
    """Forward of Conv2d3x3: kernel_size=3, padding=1, stride=2 if downsample else 1.
    Accepts/returns NCHW to match the PyTorch module."""
    stride = 2 if downsample else 1
    N, Cin, H, W = x_nchw.shape
    Cout = weight_oihw.shape[0]
    Ho = (H + 2 - 3) // stride + 1
    Wo = (W + 2 - 3) // stride + 1

    TH = _pick_row_tile(Ho, Wo)
    nrt = Ho // TH
    TH_in = stride * TH + 2        # input rows needed per output-row tile
    Hp = stride * Ho + 2           # padded height (>= H+2, fixed-size windows)
    Wp = stride * Wo + 2           # padded width

    # NCHW -> NHWC and zero padding ("same" pad of 1; bottom/right padded up to
    # (Hp, Wp) so every tile's window is a fixed-size, in-bounds slice).
    # Note: keeping the surrounding model in NHWC would drop this transpose/pad
    # HBM round trip entirely (the kernel itself is NHWC-native).
    x_nhwc = jnp.transpose(x_nchw, (0, 2, 3, 1))
    x_pad = jnp.pad(x_nhwc, ((0, 0), (1, Hp - 1 - H), (1, Wp - 1 - W), (0, 0)))

    # Column-parity planes: plane p holds padded columns p, p+stride, ... so the
    # kernel only ever needs contiguous column slices (even for stride=2).
    if stride == 1:
        planes = [x_pad]
    else:
        planes = [x_pad[:, :, p::stride, :] for p in range(stride)]

    # Weights (Cout, Cin, 3, 3) -> (Cout, 9*Cin) with K ordered (kh, kw, cin),
    # matching the kernel's im2col patch. Bias as a (Cout, 1) column.
    w2d = jnp.transpose(weight_oihw, (0, 2, 3, 1)).reshape(Cout, 9 * Cin)
    b2d = bias.reshape(Cout, 1)

    kernel = functools.partial(
        _conv3x3_kernel,
        TH=TH, TH_in=TH_in, Wo=Wo, Cin=Cin, Cout=Cout, stride=stride)

    in_specs = [
        pl.BlockSpec((1, Hp, pln.shape[2], Cin), lambda n, r: (n, 0, 0, 0))
        for pln in planes
    ]
    in_specs += [
        pl.BlockSpec((Cout, 9 * Cin), lambda n, r: (0, 0)),
        pl.BlockSpec((Cout, 1), lambda n, r: (0, 0)),
    ]

    out_flat = pl.pallas_call(
        kernel,
        out_shape=jax.ShapeDtypeStruct((N, Cout, Ho * Wo), x_nchw.dtype),
        grid_spec=pltpu.PrefetchScalarGridSpec(
            num_scalar_prefetch=0,
            grid=(N, nrt),
            in_specs=in_specs,
            out_specs=pl.BlockSpec((1, Cout, TH * Wo), lambda n, r: (n, 0, r)),
        ),
        compiler_params=pltpu.CompilerParams(
            dimension_semantics=("parallel", "parallel"),
            vmem_limit_bytes=48 * 1024 * 1024,
        ),
    )(*planes, w2d, b2d)

    # (N, Cout, Ho*Wo) is already channel-major: NCHW via a free reshape.
    return out_flat.reshape(N, Cout, Ho, Wo)


if __name__ == "__main__":
    key = jax.random.PRNGKey(0)
    k_x, k_w, k_b = jax.random.split(key, 3)

    # Small shapes consistent with the module: batch=2, in_ch=4, out_ch=8, 16x16.
    N, Cin, Cout, H, W = 2, 4, 8, 16, 16
    x = jax.random.normal(k_x, (N, Cin, H, W), dtype=jnp.float32)

    # Deterministic parameter init (Conv2d weight: (Cout, Cin, 3, 3), bias: (Cout,)).
    fan_in = Cin * 3 * 3
    bound = 1.0 / (fan_in ** 0.5)
    weight = jax.random.uniform(k_w, (Cout, Cin, 3, 3), jnp.float32, -bound, bound)
    bias = jax.random.uniform(k_b, (Cout,), jnp.float32, -bound, bound)

    # Exercise both module configurations: downsample=False (stride 1) and True (stride 2).
    for downsample in (False, True):
        stride = 2 if downsample else 1
        out = conv2d3x3(x, weight, bias, downsample=downsample)
        out = jax.block_until_ready(out)

        ref = jax.lax.conv_general_dilated(
            x, weight, window_strides=(stride, stride), padding=((1, 1), (1, 1)),
            dimension_numbers=("NCHW", "OIHW", "NCHW"),
        ) + bias.reshape(1, Cout, 1, 1)

        assert out.shape == ref.shape, (out.shape, ref.shape)
        assert jnp.allclose(out, ref, atol=1e-4, rtol=1e-4), (
            f"mismatch (downsample={downsample}): "
            f"max abs err {jnp.max(jnp.abs(out - ref))}")

    print("KERNEL_OK")
</pallas_src>

<mosaic_0001>
module attributes {stable_mosaic.version = 11 : i64} {
  func.func @_conv3x3_kernel(%arg0: i32, %arg1: i32, %arg2: memref<1x18x18x4xf32, #tpu.memory_space<vmem>>, %arg3: memref<8x36xf32, #tpu.memory_space<vmem>>, %arg4: memref<8x1xf32, #tpu.memory_space<vmem>>, %arg5: memref<1x8x128xf32, #tpu.memory_space<vmem>>) attributes {dimension_semantics = [#tpu.dimension_semantics<parallel>, #tpu.dimension_semantics<parallel>], iteration_bounds = array<i64: 2, 2>, scalar_prefetch = 0 : i64, scratch_operands = 0 : i64, tpu.core_type = #tpu.core_type<tc>, window_params = [{transform_indices = @transform_0, window_bounds = array<i64: 1, 18, 18, 4>}, {pipeline_mode = #tpu.pipeline_mode<synchronous>, transform_indices = @transform_1, window_bounds = array<i64: 8, 36>}, {pipeline_mode = #tpu.pipeline_mode<synchronous>, transform_indices = @transform_2, window_bounds = array<i64: 8, 1>}, {transform_indices = @transform_3, window_bounds = array<i64: 1, 8, 128>}]} {
    %c8_i32 = arith.constant 8 : i32
    %0 = arith.muli %arg1, %c8_i32 : i32
    %1 = tpu.assume_multiple %0, 8 : i32
    %c0 = arith.constant 0 : index
    %2 = arith.index_cast %1 : i32 to index
    %c0_0 = arith.constant 0 : index
    %c0_1 = arith.constant 0 : index
    %3 = vector.load %arg2[%c0, %2, %c0_0, %c0_1] : memref<1x18x18x4xf32, #tpu.memory_space<vmem>>, vector<1x10x18x4xf32>
    %4 = vector.shape_cast %3 : vector<1x10x18x4xf32> to vector<10x18x4xf32>
    %5 = vector.extract_strided_slice %4 {offsets = [0, 0, 0], sizes = [8, 18, 4], strides = [1, 1, 1]} : vector<10x18x4xf32> to vector<8x18x4xf32>
    %6 = vector.extract_strided_slice %5 {offsets = [0, 0, 0], sizes = [8, 16, 4], strides = [1, 1, 1]} : vector<8x18x4xf32> to vector<8x16x4xf32>
    %7 = vector.extract_strided_slice %4 {offsets = [0, 0, 0], sizes = [8, 18, 4], strides = [1, 1, 1]} : vector<10x18x4xf32> to vector<8x18x4xf32>
    %8 = vector.extract_strided_slice %7 {offsets = [0, 1, 0], sizes = [8, 16, 4], strides = [1, 1, 1]} : vector<8x18x4xf32> to vector<8x16x4xf32>
    %9 = vector.extract_strided_slice %4 {offsets = [0, 0, 0], sizes = [8, 18, 4], strides = [1, 1, 1]} : vector<10x18x4xf32> to vector<8x18x4xf32>
    %10 = vector.extract_strided_slice %9 {offsets = [0, 2, 0], sizes = [8, 16, 4], strides = [1, 1, 1]} : vector<8x18x4xf32> to vector<8x16x4xf32>
    %11 = vector.extract_strided_slice %4 {offsets = [1, 0, 0], sizes = [8, 18, 4], strides = [1, 1, 1]} : vector<10x18x4xf32> to vector<8x18x4xf32>
    %12 = vector.extract_strided_slice %11 {offsets = [0, 0, 0], sizes = [8, 16, 4], strides = [1, 1, 1]} : vector<8x18x4xf32> to vector<8x16x4xf32>
    %13 = vector.extract_strided_slice %4 {offsets = [1, 0, 0], sizes = [8, 18, 4], strides = [1, 1, 1]} : vector<10x18x4xf32> to vector<8x18x4xf32>
    %14 = vector.extract_strided_slice %13 {offsets = [0, 1, 0], sizes = [8, 16, 4], strides = [1, 1, 1]} : vector<8x18x4xf32> to vector<8x16x4xf32>
    %15 = vector.extract_strided_slice %4 {offsets = [1, 0, 0], sizes = [8, 18, 4], strides = [1, 1, 1]} : vector<10x18x4xf32> to vector<8x18x4xf32>
    %16 = vector.extract_strided_slice %15 {offsets = [0, 2, 0], sizes = [8, 16, 4], strides = [1, 1, 1]} : vector<8x18x4xf32> to vector<8x16x4xf32>
    %17 = vector.extract_strided_slice %4 {offsets = [2, 0, 0], sizes = [8, 18, 4], strides = [1, 1, 1]} : vector<10x18x4xf32> to vector<8x18x4xf32>
    %18 = vector.extract_strided_slice %17 {offsets = [0, 0, 0], sizes = [8, 16, 4], strides = [1, 1, 1]} : vector<8x18x4xf32> to vector<8x16x4xf32>
    %19 = vector.extract_strided_slice %4 {offsets = [2, 0, 0], sizes = [8, 18, 4], strides = [1, 1, 1]} : vector<10x18x4xf32> to vector<8x18x4xf32>
    %20 = vector.extract_strided_slice %19 {offsets = [0, 1, 0], sizes = [8, 16, 4], strides = [1, 1, 1]} : vector<8x18x4xf32> to vector<8x16x4xf32>
    %21 = vector.extract_strided_slice %4 {offsets = [2, 0, 0], sizes = [8, 18, 4], strides = [1, 1, 1]} : vector<10x18x4xf32> to vector<8x18x4xf32>
    %22 = vector.extract_strided_slice %21 {offsets = [0, 2, 0], sizes = [8, 16, 4], strides = [1, 1, 1]} : vector<8x18x4xf32> to vector<8x16x4xf32>
    %23 = tpu.concatenate %6, %8, %10, %12, %14, %16, %18, %20, %22 in 2 : vector<8x16x4xf32>, vector<8x16x4xf32>, vector<8x16x4xf32>, vector<8x16x4xf32>, vector<8x16x4xf32>, vector<8x16x4xf32>, vector<8x16x4xf32>, vector<8x16x4xf32>, vector<8x16x4xf32> -> vector<8x16x36xf32>
    %24 = vector.shape_cast %23 : vector<8x16x36xf32> to vector<128x36xf32>
    %c0_2 = arith.constant 0 : index
    %c0_3 = arith.constant 0 : index
    %25 = vector.load %arg3[%c0_2, %c0_3] : memref<8x36xf32, #tpu.memory_space<vmem>>, vector<8x36xf32>
    %cst = arith.constant dense<0.000000e+00> : vector<8x128xf32>
    %26 = tpu.matmul %25, %24, %cst {dimension_numbers = #tpu.dot_dimension_numbers<[1], [1], [0], [0], [0, 0, 1, 0], [], []>} : vector<8x36xf32>, vector<128x36xf32>, vector<8x128xf32> -> vector<8x128xf32>
    %c0_4 = arith.constant 0 : index
    %c0_5 = arith.constant 0 : index
    %27 = vector.load %arg4[%c0_4, %c0_5] : memref<8x1xf32, #tpu.memory_space<vmem>>, vector<8x1xf32>
    %28 = vector.broadcast %27 : vector<8x1xf32> to vector<8x128xf32>
    %29 = arith.addf %26, %28 : vector<8x128xf32>
    %30 = vector.shape_cast %29 : vector<8x128xf32> to vector<1x8x128xf32>
    %c0_6 = arith.constant 0 : index
    %c0_7 = arith.constant 0 : index
    %c0_8 = arith.constant 0 : index
    %31 = vector.load %arg5[%c0_6, %c0_7, %c0_8] : memref<1x8x128xf32, #tpu.memory_space<vmem>>, vector<1x8x128xf32>
    tpu.vector_store %arg5[%c0_6, %c0_7, %c0_8], %30 {strides = array<i32>} : memref<1x8x128xf32, #tpu.memory_space<vmem>>, vector<1x8x128xf32>,
    return
  }
  func.func @transform_0(%arg0: i32, %arg1: i32) -> (i32, i32, i32, i32) {
    %c0_i32 = arith.constant 0 : i32
    %c0_i32_0 = arith.constant 0 : i32
    %c0_i32_1 = arith.constant 0 : i32
    %c0_i32_2 = arith.constant 0 : i32
    return %arg0, %c0_i32, %c0_i32_0, %c0_i32_1 : i32, i32, i32, i32
  }
  func.func @transform_1(%arg0: i32, %arg1: i32) -> (i32, i32) {
    %c0_i32 = arith.constant 0 : i32
    %c0_i32_0 = arith.constant 0 : i32
    %c0_i32_1 = arith.constant 0 : i32
    return %c0_i32, %c0_i32_0 : i32, i32
  }
  func.func @transform_2(%arg0: i32, %arg1: i32) -> (i32, i32) {
    %c0_i32 = arith.constant 0 : i32
    %c0_i32_0 = arith.constant 0 : i32
    %c0_i32_1 = arith.constant 0 : i32
    return %c0_i32, %c0_i32_0 : i32, i32
  }
  func.func @transform_3(%arg0: i32, %arg1: i32) -> (i32, i32, i32) {
    %c0_i32 = arith.constant 0 : i32
    %c0_i32_0 = arith.constant 0 : i32
    return %arg0, %c0_i32, %arg1 : i32, i32, i32
  }
}

</mosaic_0001>

<llo_original>
// kernel: tpu_custom_call.1
$region0: #{tpu_custom_call.1}
  #allocation0 [shape = 'u32[]', space=smem, size = 0x4, offset = 0x4, fixed_abs, tag = 'smem constant byte address 0x4 - core index']
  #allocation1 [shape = 'u32[144,128]{1,0:T(1,128)}', space=vmem, size = 0x12000, scoped, tag = 'internal scratch']
  %s0 = inlined_call_operand.vmem [shape: f32[2,18,18,4], index: 0, kind: input, shape index: {}]
  %s1 = inlined_call_operand.vmem [shape: f32[8,36], index: 1, kind: input, shape index: {}]
  %s2 = inlined_call_operand.vmem [shape: f32[8,1], index: 2, kind: input, shape index: {}]
  %s3 = inlined_call_operand.hbm [shape: f32[2,8,256], index: 3, kind: output, shape index: {}]
  %s4 = sld [smem:[#allocation0]]
  $region45: #{tpu_custom_call.1} parent=0
    _
  %s6 = ssub.s32 1, %s4
  %s7 = scalar_select 0, %s6, %s4
  $region1: #{tpu_custom_call.1} parent=0
    #allocation2 [shape = 'u8[8192]{0}', space=vmem, size = 0x2000, scoped, tag = 'output window, operand 0']
    #allocation3 [shape = 's32[2]{0}', space=sflag, size = 0x8, scoped, tag = 'scoped memory for tpu_custom_call.1']
    %8 = vsyncpa [#allocation3], 0
    %s9 = scalar_lea.sflag [#allocation3], 1
    %10 = vsyncpa %s9, 0
    loop: start=0, step=1, limit=6
    $region2: #{tpu_custom_call.1} parent=1 // loop_pre_header
      _
    $region3: #{tpu_custom_call.1} parent=1 // loop_header
      %s12 = sphi 0, %s16
      %p13 = scmp.ge.s32.totalorder %s12, 6
      %s19 = sphi 0, %s31
      %s20 = sphi 0, %s27
      %s21 = sphi 0, %s19
      %s22 = sphi 0, %s20
      %s23 = sphi 0, %s21
      %s24 = sphi 0, %s22
      %s34 = sphi 0, %s36
      %s37 = sphi 0, %s34
      %s38 = sphi 0, %s37
      %s54 = sphi 0, %s38
      %s58 = sphi 0, %s58
      %s60 = sphi 0, %s58
      %s61 = sphi 0, %s60
      %s75 = sphi 0, %s61
      %s79 = sphi 0, %s79
      %s81 = sphi 0, %s79
      %s82 = sphi 0, %s81
      %s96 = sphi 0, %s82
      %s104 = sphi 0, %s106
      %s107 = sphi 0, %s104
      %s108 = sphi 0, %s107
      %s124 = sphi 0, %s108
    $region4: #{tpu_custom_call.1} parent=1 // loop_header_branch
      %15 = sbr.rel (%p13) target = $region8
    $region5: #{tpu_custom_call.1} parent=1 // loop_body
      %s17 = ssub.s32 %s12, 1
      %s18 = ssub.s32 %s12, 2
      %s25 = sadd.s32 1, %s20
      %p26 = scmp.ge.s32.totalorder %s25, 2
      %s27 = scalar_select %p26, 0, %s25
      %s28 = sadd.s32 1, %s19
      %s29 = scalar_select %p26, %s28, %s19
      %p30 = scmp.ge.s32.totalorder %s29, 2
      %s31 = scalar_select %p30, 0, %s29
      %s32 = ssub.s32 %s19, %s31
      %p33 = scmp.eq.s32.totalorder %s32, 0
      %s35 = sadd.s32 %s34, 1
      %s36 = scalar_select %p33, %s34, %s35
      %p39 = pneg %p33
      %p40 = scmp.eq.s32.totalorder %s12, 3
      %p41 = por %p39, %p40
      %p42 = scmp.ne.s32.totalorder %s34, %s37
      %p43 = scmp.eq.s32.totalorder %s12, 0
      %p44 = por %p42, %p43
      %p45 = scmp.ne.s32.totalorder %s34, %s37
      %p46 = scmp.eq.s32.totalorder %s17, 3
      %p47 = por %p45, %p46
      %p48 = scmp.ne.s32.totalorder %s37, %s38
      %p49 = scmp.eq.s32.totalorder %s17, 0
      %p50 = por %p48, %p49
      %p51 = scmp.ne.s32.totalorder %s37, %s38
      %p52 = scmp.eq.s32.totalorder %s18, 3
      %p53 = por %p51, %p52
      %p55 = scmp.ne.s32.totalorder %s38, %s54
      %p56 = scmp.eq.s32.totalorder %s18, 0
      %p57 = por %p55, %p56
      %s59 = sadd.s32 %s58, 1
      %p62 = scmp.eq.s32.totalorder %s12, 3
      %p63 = scmp.ne.s32.totalorder %s58, %s60
      %p64 = scmp.eq.s32.totalorder %s12, 0
      %p65 = por %p63, %p64
      %p66 = scmp.ne.s32.totalorder %s58, %s60
      %p67 = scmp.eq.s32.totalorder %s17, 3
      %p68 = por %p66, %p67
      %p69 = scmp.ne.s32.totalorder %s60, %s61
      %p70 = scmp.eq.s32.totalorder %s17, 0
      %p71 = por %p69, %p70
      %p72 = scmp.ne.s32.totalorder %s60, %s61
      %p73 = scmp.eq.s32.totalorder %s18, 3
      %p74 = por %p72, %p73
      %p76 = scmp.ne.s32.totalorder %s61, %s75
      %p77 = scmp.eq.s32.totalorder %s18, 0
      %p78 = por %p76, %p77
      %s80 = sadd.s32 %s79, 1
      %p83 = scmp.eq.s32.totalorder %s12, 3
      %p84 = scmp.ne.s32.totalorder %s79, %s81
      %p85 = scmp.eq.s32.totalorder %s12, 0
      %p86 = por %p84, %p85
      %p87 = scmp.ne.s32.totalorder %s79, %s81
      %p88 = scmp.eq.s32.totalorder %s17, 3
      %p89 = por %p87, %p88
      %p90 = scmp.ne.s32.totalorder %s81, %s82
      %p91 = scmp.eq.s32.totalorder %s17, 0
      %p92 = por %p90, %p91
      %p93 = scmp.ne.s32.totalorder %s81, %s82
      %p94 = scmp.eq.s32.totalorder %s18, 3
      %p95 = por %p93, %p94
      %p97 = scmp.ne.s32.totalorder %s82, %s96
      %p98 = scmp.eq.s32.totalorder %s18, 0
      %p99 = por %p97, %p98
      %s100 = ssub.s32 %s19, %s31
      %s101 = ssub.s32 %s20, %s27
      %s102 = sor.u32 %s100, %s101
      %p103 = scmp.eq.s32.totalorder %s102, 0
      %s105 = sadd.s32 %s104, 1
      %s106 = scalar_select %p103, %s104, %s105
      %p109 = pneg %p103
      %p110 = scmp.eq.s32.totalorder %s12, 3
      %p111 = por %p109, %p110
      %p112 = scmp.ne.s32.totalorder %s104, %s107
      %p113 = scmp.eq.s32.totalorder %s12, 0
      %p114 = por %p112, %p113
      %p115 = scmp.ne.s32.totalorder %s104, %s107
      %p116 = scmp.eq.s32.totalorder %s17, 3
      %p117 = por %p115, %p116
      %p118 = scmp.ne.s32.totalorder %s107, %s108
      %p119 = scmp.eq.s32.totalorder %s17, 0
      %p120 = por %p118, %p119
      %p121 = scmp.ne.s32.totalorder %s107, %s108
      %p122 = scmp.eq.s32.totalorder %s18, 3
      %p123 = por %p121, %p122
      %p125 = scmp.ne.s32.totalorder %s108, %s124
      %p126 = scmp.eq.s32.totalorder %s18, 0
      %p127 = por %p125, %p126
      %p128 = scmp.le.s32.totalorder 1, %s12
      %p129 = scmp.lt.s32.totalorder %s12, 5
      %p130 = pnand %p128, %p129
      %p131 = pneg %p130
      // Predicated region
      $region9: #{tpu_custom_call.1} parent=5 // pred_check
        _
      $region10: #{tpu_custom_call.1} parent=5 // pred_check_branch
        %133 = sbr.rel (%p130) target = $region12
      $region11: #{tpu_custom_call.1} parent=5 // pred_region
        %s134 = ssub.s32 %s12, 1
        // Predicated region
        $region13: #{tpu_custom_call.1} parent=11 // pred_check
          %p135 = pneg %p71
        $region14: #{tpu_custom_call.1} parent=11 // pred_check_branch
          %137 = sbr.rel (%p135) target = $region16
        $region15: #{tpu_custom_call.1} parent=11 // pred_region
          _
        $region16: #{tpu_custom_call.1} parent=11 // pred_fallthru
          _
        // Predicated region
        $region17: #{tpu_custom_call.1} parent=11 // pred_check
          %p138 = pneg %p92
        $region18: #{tpu_custom_call.1} parent=11 // pred_check_branch
          %140 = sbr.rel (%p138) target = $region20
        $region19: #{tpu_custom_call.1} parent=11 // pred_region
          _
        $region20: #{tpu_custom_call.1} parent=11 // pred_fallthru
          _
      $region12: #{tpu_custom_call.1} parent=5 // pred_fallthru
        _
      %p141 = scmp.lt.s32.totalorder %s12, 4
      // Predicated region
      $region21: #{tpu_custom_call.1} parent=5 // pred_check
        %p142 = pneg %p141
      $region22: #{tpu_custom_call.1} parent=5 // pred_check_branch
        %144 = sbr.rel (%p142) target = $region24
      $region23: #{tpu_custom_call.1} parent=5 // pred_region
        // Predicated region
        $region25: #{tpu_custom_call.1} parent=23 // pred_check
          %p145 = pneg %p44
        $region26: #{tpu_custom_call.1} parent=23 // pred_check_branch
          %147 = sbr.rel (%p145) target = $region28
        $region27: #{tpu_custom_call.1} parent=23 // pred_region
          %p148 = scmp.lt.s32.totalorder %s19, 1
          %s149 = scalar_select %p148, %s19, 1
          %s150 = smul.addr %s149, 54
          %s151 = smul.addr %s150, 8
          %s152 = scalar_lea.vmem %s0, %s151
        $region28: #{tpu_custom_call.1} parent=23 // pred_fallthru
          _
      $region24: #{tpu_custom_call.1} parent=5 // pred_fallthru
        _
      %p153 = scmp.le.s32.totalorder 1, %s12
      %p154 = scmp.lt.s32.totalorder %s12, 5
      %p155 = pnand %p153, %p154
      %p156 = pneg %p155
      // Predicated region
      $region29: #{tpu_custom_call.1} parent=5 // pred_check
        _
      $region30: #{tpu_custom_call.1} parent=5 // pred_check_branch
        %158 = sbr.rel (%p155) target = $region32
      $region31: #{tpu_custom_call.1} parent=5 // pred_region
        %s159 = ssub.s32 %s12, 1
        %p160 = scmp.lt.s32.totalorder %s21, 1
        %s161 = scalar_select %p160, %s21, 1
        %s162 = smul.addr %s161, 54
        %s163 = smul.addr %s162, 8
        %s164 = scalar_lea.vmem %s0, %s163
        %p165 = pneg %p50
        %p166 = pneg %p47
        %p167 = pneg %p71
        %p168 = pneg %p68
        %p169 = pneg %p92
        %p170 = pneg %p89
        %p171 = pneg %p120
        %p172 = pneg %p117
        %s173 = sand.u32 %s107, 1
        %s174 = scalar_lea.sflag [#allocation3], %s173
        %s175 = sand.u32 %s107, 1
        %s176 = smul.addr %s175, 8
        %s177 = scalar_lea.vmem [#allocation2], %s176
        %p178 = scmp.lt.s32.totalorder %s21, 1
        %s179 = scalar_select %p178, %s21, 1
        %s180 = smul.addr %s179, 54
        %s181 = smul.addr %s180, 8
        %s182 = scalar_lea.vmem %s0, %s181
        %s183 = smul.u32 %s22, 8
        %s184 = smul.u32 %s183, 24
        %s185 = scalar_lea.vmem %s182, %s184
        %v186 = vld [vmem:[%s185] sm:$0xff]
        %v187 = vld [vmem:[%s185 + $0x8] sm:$0xff]
        %v188 = vld [vmem:[%s185 + $0x10] sm:$0x3]
        %v189 = vld [vmem:[%s185 + $0x18] sm:$0xff]
        %v190 = vld [vmem:[%s185 + $0x20] sm:$0xff]
        %v191 = vld [vmem:[%s185 + $0x28] sm:$0x3]
        %v192 = vld [vmem:[%s185 + $0x30] sm:$0xff]
        %v193 = vld [vmem:[%s185 + $0x38] sm:$0xff]
        %v194 = vld [vmem:[%s185 + $0x40] sm:$0x3]
        %v195 = vld [vmem:[%s185 + $0x48] sm:$0xff]
        %v196 = vld [vmem:[%s185 + $0x50] sm:$0xff]
        %v197 = vld [vmem:[%s185 + $0x58] sm:$0x3]
        %v198 = vld [vmem:[%s185 + $0x60] sm:$0xff]
        %v199 = vld [vmem:[%s185 + $0x68] sm:$0xff]
        %v200 = vld [vmem:[%s185 + $0x70] sm:$0x3]
        %v201 = vld [vmem:[%s185 + $0x78] sm:$0xff]
        %v202 = vld [vmem:[%s185 + $0x80] sm:$0xff]
        %v203 = vld [vmem:[%s185 + $0x88] sm:$0x3]
        %v204 = vld [vmem:[%s185 + $0x90] sm:$0xff]
        %v205 = vld [vmem:[%s185 + $0x98] sm:$0xff]
        %v206 = vld [vmem:[%s185 + $0xa0] sm:$0x3]
        %v207 = vld [vmem:[%s185 + $0xa8] sm:$0xff]
        %v208 = vld [vmem:[%s185 + $0xb0] sm:$0xff]
        %v209 = vld [vmem:[%s185 + $0xb8] sm:$0x3]
        %v210 = vld [vmem:[%s185 + $0xc0] sm:$0xff]
        %v211 = vld [vmem:[%s185 + $0xc8] sm:$0xff]
        %v212 = vld [vmem:[%s185 + $0xd0] sm:$0x3]
        %v213 = vld [vmem:[%s185 + $0xd8] sm:$0xff]
        %v214 = vld [vmem:[%s185 + $0xe0] sm:$0xff]
        %v215 = vld [vmem:[%s185 + $0xe8] sm:$0x3]
        %vm240 = vcmask 1046528
        %v241 = vrot.slane %v186, 1
        %v242 = vrot.slane %v187, 1
        %v243 = vsel %vm240, %v241, %v242
        %v244 = vrot.slane %v188, 1
        %v245 = vsel %vm240, %v242, %v244
        %v246 = vrot.slane %v189, 1
        %v247 = vrot.slane %v190, 1
        %v248 = vsel %vm240, %v246, %v247
        %v249 = vrot.slane %v191, 1
        %v250 = vsel %vm240, %v247, %v249
        %v251 = vrot.slane %v192, 1
        %v252 = vrot.slane %v193, 1
        %v253 = vsel %vm240, %v251, %v252
        %v254 = vrot.slane %v194, 1
        %v255 = vsel %vm240, %v252, %v254
        %v256 = vrot.slane %v195, 1
        %v257 = vrot.slane %v196, 1
        %v258 = vsel %vm240, %v256, %v257
        %v259 = vrot.slane %v197, 1
        %v260 = vsel %vm240, %v257, %v259
        %v261 = vrot.slane %v198, 1
        %v262 = vrot.slane %v199, 1
        %v263 = vsel %vm240, %v261, %v262
        %v264 = vrot.slane %v200, 1
        %v265 = vsel %vm240, %v262, %v264
        %v266 = vrot.slane %v201, 1
        %v267 = vrot.slane %v202, 1
        %v268 = vsel %vm240, %v266, %v267
        %v269 = vrot.slane %v203, 1
        %v270 = vsel %vm240, %v267, %v269
        %v271 = vrot.slane %v204, 1
        %v272 = vrot.slane %v205, 1
        %v273 = vsel %vm240, %v271, %v272
        %v274 = vrot.slane %v206, 1
        %v275 = vsel %vm240, %v272, %v274
        %v276 = vrot.slane %v207, 1
        %v277 = vrot.slane %v208, 1
        %v278 = vsel %vm240, %v276, %v277
        %v279 = vrot.slane %v209, 1
        %v280 = vsel %vm240, %v277, %v279
        %281 = vrot.lane.b32.xlu0 %v243, 4
        %v282 = vpop.permute.xlu0 %281
        %283 = vrot.lane.b32.xlu0 %v245, 4
        %v284 = vpop.permute.xlu0 %283
        %285 = vrot.lane.b32.xlu0 %v248, 4
        %v286 = vpop.permute.xlu0 %285
        %287 = vrot.lane.b32.xlu0 %v250, 4
        %v288 = vpop.permute.xlu0 %287
        %289 = vrot.lane.b32.xlu0 %v253, 4
        %v290 = vpop.permute.xlu0 %289
        %291 = vrot.lane.b32.xlu0 %v255, 4
        %v292 = vpop.permute.xlu0 %291
        %293 = vrot.lane.b32.xlu0 %v258, 4
        %v294 = vpop.permute.xlu0 %293
        %295 = vrot.lane.b32.xlu0 %v260, 4
        %v296 = vpop.permute.xlu0 %295
        %297 = vrot.lane.b32.xlu0 %v263, 4
        %v298 = vpop.permute.xlu0 %297
        %299 = vrot.lane.b32.xlu0 %v265, 4
        %v300 = vpop.permute.xlu0 %299
        %301 = vrot.lane.b32.xlu0 %v268, 4
        %v302 = vpop.permute.xlu0 %301
        %303 = vrot.lane.b32.xlu0 %v270, 4
        %v304 = vpop.permute.xlu0 %303
        %305 = vrot.lane.b32.xlu0 %v273, 4
        %v306 = vpop.permute.xlu0 %305
        %307 = vrot.lane.b32.xlu0 %v275, 4
        %v308 = vpop.permute.xlu0 %307
        %309 = vrot.lane.b32.xlu0 %v278, 4
        %v310 = vpop.permute.xlu0 %309
        %311 = vrot.lane.b32.xlu0 %v280, 4
        %v312 = vpop.permute.xlu0 %311
        %vm329 = vcmask 1045504
        %v330 = vrot.slane %v186, 2
        %v331 = vrot.slane %v187, 2
        %v332 = vsel %vm329, %v330, %v331
        %v333 = vrot.slane %v188, 2
        %v334 = vsel %vm329, %v331, %v333
        %v335 = vrot.slane %v189, 2
        %v336 = vrot.slane %v190, 2
        %v337 = vsel %vm329, %v335, %v336
        %v338 = vrot.slane %v191, 2
        %v339 = vsel %vm329, %v336, %v338
        %v340 = vrot.slane %v192, 2
        %v341 = vrot.slane %v193, 2
        %v342 = vsel %vm329, %v340, %v341
        %v343 = vrot.slane %v194, 2
        %v344 = vsel %vm329, %v341, %v343
        %v345 = vrot.slane %v195, 2
        %v346 = vrot.slane %v196, 2
        %v347 = vsel %vm329, %v345, %v346
        %v348 = vrot.slane %v197, 2
        %v349 = vsel %vm329, %v346, %v348
        %v350 = vrot.slane %v198, 2
        %v351 = vrot.slane %v199, 2
        %v352 = vsel %vm329, %v350, %v351
        %v353 = vrot.slane %v200, 2
        %v354 = vsel %vm329, %v351, %v353
        %v355 = vrot.slane %v201, 2
        %v356 = vrot.slane %v202, 2
        %v357 = vsel %vm329, %v355, %v356
        %v358 = vrot.slane %v203, 2
        %v359 = vsel %vm329, %v356, %v358
        %v360 = vrot.slane %v204, 2
        %v361 = vrot.slane %v205, 2
        %v362 = vsel %vm329, %v360, %v361
        %v363 = vrot.slane %v206, 2
        %v364 = vsel %vm329, %v361, %v363
        %v365 = vrot.slane %v207, 2
        %v366 = vrot.slane %v208, 2
        %v367 = vsel %vm329, %v365, %v366
        %v368 = vrot.slane %v209, 2
        %v369 = vsel %vm329, %v366, %v368
        %370 = vrot.lane.b32.xlu0 %v332, 8
        %v371 = vpop.permute.xlu0 %370
        %372 = vrot.lane.b32.xlu0 %v334, 8
        %v373 = vpop.permute.xlu0 %372
        %374 = vrot.lane.b32.xlu0 %v337, 8
        %v375 = vpop.permute.xlu0 %374
        %376 = vrot.lane.b32.xlu0 %v339, 8
        %v377 = vpop.permute.xlu0 %376
        %378 = vrot.lane.b32.xlu0 %v342, 8
        %v379 = vpop.permute.xlu0 %378
        %380 = vrot.lane.b32.xlu0 %v344, 8
        %v381 = vpop.permute.xlu0 %380
        %382 = vrot.lane.b32.xlu0 %v347, 8
        %v383 = vpop.permute.xlu0 %382
        %384 = vrot.lane.b32.xlu0 %v349, 8
        %v385 = vpop.permute.xlu0 %384
        %386 = vrot.lane.b32.xlu0 %v352, 8
        %v387 = vpop.permute.xlu0 %386
        %388 = vrot.lane.b32.xlu0 %v354, 8
        %v389 = vpop.permute.xlu0 %388
        %390 = vrot.lane.b32.xlu0 %v357, 8
        %v391 = vpop.permute.xlu0 %390
        %392 = vrot.lane.b32.xlu0 %v359, 8
        %v393 = vpop.permute.xlu0 %392
        %394 = vrot.lane.b32.xlu0 %v362, 8
        %v395 = vpop.permute.xlu0 %394
        %396 = vrot.lane.b32.xlu0 %v364, 8
        %v397 = vpop.permute.xlu0 %396
        %398 = vrot.lane.b32.xlu0 %v367, 8
        %v399 = vpop.permute.xlu0 %398
        %400 = vrot.lane.b32.xlu0 %v369, 8
        %v401 = vpop.permute.xlu0 %400
        %420 = vrot.lane.b32.xlu0 %v189, 12
        %v421 = vpop.permute.xlu0 %420
        %422 = vrot.lane.b32.xlu0 %v190, 12
        %v423 = vpop.permute.xlu0 %422
        %424 = vrot.lane.b32.xlu0 %v192, 12
        %v425 = vpop.permute.xlu0 %424
        %426 = vrot.lane.b32.xlu0 %v193, 12
        %v427 = vpop.permute.xlu0 %426
        %428 = vrot.lane.b32.xlu0 %v195, 12
        %v429 = vpop.permute.xlu0 %428
        %430 = vrot.lane.b32.xlu0 %v196, 12
        %v431 = vpop.permute.xlu0 %430
        %432 = vrot.lane.b32.xlu0 %v198, 12
        %v433 = vpop.permute.xlu0 %432
        %434 = vrot.lane.b32.xlu0 %v199, 12
        %v435 = vpop.permute.xlu0 %434
        %436 = vrot.lane.b32.xlu0 %v201, 12
        %v437 = vpop.permute.xlu0 %436
        %438 = vrot.lane.b32.xlu0 %v202, 12
        %v439 = vpop.permute.xlu0 %438
        %440 = vrot.lane.b32.xlu0 %v204, 12
        %v441 = vpop.permute.xlu0 %440
        %442 = vrot.lane.b32.xlu0 %v205, 12
        %v443 = vpop.permute.xlu0 %442
        %444 = vrot.lane.b32.xlu0 %v207, 12
        %v445 = vpop.permute.xlu0 %444
        %446 = vrot.lane.b32.xlu0 %v208, 12
        %v447 = vpop.permute.xlu0 %446
        %448 = vrot.lane.b32.xlu0 %v210, 12
        %v449 = vpop.permute.xlu0 %448
        %450 = vrot.lane.b32.xlu0 %v211, 12
        %v451 = vpop.permute.xlu0 %450
        %v469 = vrot.slane %v210, 1
        %v470 = vrot.slane %v211, 1
        %v471 = vsel %vm240, %v469, %v470
        %v472 = vrot.slane %v212, 1
        %v473 = vsel %vm240, %v470, %v472
        %474 = vrot.lane.b32.xlu0 %v248, 16
        %v475 = vpop.permute.xlu0 %474
        %476 = vrot.lane.b32.xlu0 %v250, 16
        %v477 = vpop.permute.xlu0 %476
        %478 = vrot.lane.b32.xlu0 %v253, 16
        %v479 = vpop.permute.xlu0 %478
        %480 = vrot.lane.b32.xlu0 %v255, 16
        %v481 = vpop.permute.xlu0 %480
        %482 = vrot.lane.b32.xlu0 %v258, 16
        %v483 = vpop.permute.xlu0 %482
        %484 = vrot.lane.b32.xlu0 %v260, 16
        %v485 = vpop.permute.xlu0 %484
        %486 = vrot.lane.b32.xlu0 %v263, 16
        %v487 = vpop.permute.xlu0 %486
        %488 = vrot.lane.b32.xlu0 %v265, 16
        %v489 = vpop.permute.xlu0 %488
        %490 = vrot.lane.b32.xlu0 %v268, 16
        %v491 = vpop.permute.xlu0 %490
        %492 = vrot.lane.b32.xlu0 %v270, 16
        %v493 = vpop.permute.xlu0 %492
        %494 = vrot.lane.b32.xlu0 %v273, 16
        %v495 = vpop.permute.xlu0 %494
        %496 = vrot.lane.b32.xlu0 %v275, 16
        %v497 = vpop.permute.xlu0 %496
        %498 = vrot.lane.b32.xlu0 %v278, 16
        %v499 = vpop.permute.xlu0 %498
        %500 = vrot.lane.b32.xlu0 %v280, 16
        %v501 = vpop.permute.xlu0 %500
        %502 = vrot.lane.b32.xlu0 %v471, 16
        %v503 = vpop.permute.xlu0 %502
        %504 = vrot.lane.b32.xlu0 %v473, 16
        %v505 = vpop.permute.xlu0 %504
        %v522 = vrot.slane %v210, 2
        %v523 = vrot.slane %v211, 2
        %v524 = vsel %vm329, %v522, %v523
        %v525 = vrot.slane %v212, 2
        %v526 = vsel %vm329, %v523, %v525
        %527 = vrot.lane.b32.xlu0 %v337, 20
        %v528 = vpop.permute.xlu0 %527
        %529 = vrot.lane.b32.xlu0 %v339, 20
        %v530 = vpop.permute.xlu0 %529
        %531 = vrot.lane.b32.xlu0 %v342, 20
        %v532 = vpop.permute.xlu0 %531
        %533 = vrot.lane.b32.xlu0 %v344, 20
        %v534 = vpop.permute.xlu0 %533
        %535 = vrot.lane.b32.xlu0 %v347, 20
        %v536 = vpop.permute.xlu0 %535
        %537 = vrot.lane.b32.xlu0 %v349, 20
        %v538 = vpop.permute.xlu0 %537
        %539 = vrot.lane.b32.xlu0 %v352, 20
        %v540 = vpop.permute.xlu0 %539
        %541 = vrot.lane.b32.xlu0 %v354, 20
        %v542 = vpop.permute.xlu0 %541
        %543 = vrot.lane.b32.xlu0 %v357, 20
        %v544 = vpop.permute.xlu0 %543
        %545 = vrot.lane.b32.xlu0 %v359, 20
        %v546 = vpop.permute.xlu0 %545
        %547 = vrot.lane.b32.xlu0 %v362, 20
        %v548 = vpop.permute.xlu0 %547
        %549 = vrot.lane.b32.xlu0 %v364, 20
        %v550 = vpop.permute.xlu0 %549
        %551 = vrot.lane.b32.xlu0 %v367, 20
        %v552 = vpop.permute.xlu0 %551
        %553 = vrot.lane.b32.xlu0 %v369, 20
        %v554 = vpop.permute.xlu0 %553
        %555 = vrot.lane.b32.xlu0 %v524, 20
        %v556 = vpop.permute.xlu0 %555
        %557 = vrot.lane.b32.xlu0 %v526, 20
        %v558 = vpop.permute.xlu0 %557
        %577 = vrot.lane.b32.xlu0 %v192, 24
        %v578 = vpop.permute.xlu0 %577
        %579 = vrot.lane.b32.xlu0 %v193, 24
        %v580 = vpop.permute.xlu0 %579
        %581 = vrot.lane.b32.xlu0 %v195, 24
        %v582 = vpop.permute.xlu0 %581
        %583 = vrot.lane.b32.xlu0 %v196, 24
        %v584 = vpop.permute.xlu0 %583
        %585 = vrot.lane.b32.xlu0 %v198, 24
        %v586 = vpop.permute.xlu0 %585
        %587 = vrot.lane.b32.xlu0 %v199, 24
        %v588 = vpop.permute.xlu0 %587
        %589 = vrot.lane.b32.xlu0 %v201, 24
        %v590 = vpop.permute.xlu0 %589
        %591 = vrot.lane.b32.xlu0 %v202, 24
        %v592 = vpop.permute.xlu0 %591
        %593 = vrot.lane.b32.xlu0 %v204, 24
        %v594 = vpop.permute.xlu0 %593
        %595 = vrot.lane.b32.xlu0 %v205, 24
        %v596 = vpop.permute.xlu0 %595
        %597 = vrot.lane.b32.xlu0 %v207, 24
        %v598 = vpop.permute.xlu0 %597
        %599 = vrot.lane.b32.xlu0 %v208, 24
        %v600 = vpop.permute.xlu0 %599
        %601 = vrot.lane.b32.xlu0 %v210, 24
        %v602 = vpop.permute.xlu0 %601
        %603 = vrot.lane.b32.xlu0 %v211, 24
        %v604 = vpop.permute.xlu0 %603
        %605 = vrot.lane.b32.xlu0 %v213, 24
        %v606 = vpop.permute.xlu0 %605
        %607 = vrot.lane.b32.xlu0 %v214, 24
        %v608 = vpop.permute.xlu0 %607
        %v626 = vrot.slane %v213, 1
        %v627 = vrot.slane %v214, 1
        %v628 = vsel %vm240, %v626, %v627
        %v629 = vrot.slane %v215, 1
        %v630 = vsel %vm240, %v627, %v629
        %631 = vrot.lane.b32.xlu0 %v253, 28
        %v632 = vpop.permute.xlu0 %631
        %633 = vrot.lane.b32.xlu0 %v255, 28
        %v634 = vpop.permute.xlu0 %633
        %635 = vrot.lane.b32.xlu0 %v258, 28
        %v636 = vpop.permute.xlu0 %635
        %637 = vrot.lane.b32.xlu0 %v260, 28
        %v638 = vpop.permute.xlu0 %637
        %639 = vrot.lane.b32.xlu0 %v263, 28
        %v640 = vpop.permute.xlu0 %639
        %641 = vrot.lane.b32.xlu0 %v265, 28
        %v642 = vpop.permute.xlu0 %641
        %643 = vrot.lane.b32.xlu0 %v268, 28
        %v644 = vpop.permute.xlu0 %643
        %645 = vrot.lane.b32.xlu0 %v270, 28
        %v646 = vpop.permute.xlu0 %645
        %647 = vrot.lane.b32.xlu0 %v273, 28
        %v648 = vpop.permute.xlu0 %647
        %649 = vrot.lane.b32.xlu0 %v275, 28
        %v650 = vpop.permute.xlu0 %649
        %651 = vrot.lane.b32.xlu0 %v278, 28
        %v652 = vpop.permute.xlu0 %651
        %653 = vrot.lane.b32.xlu0 %v280, 28
        %v654 = vpop.permute.xlu0 %653
        %655 = vrot.lane.b32.xlu0 %v471, 28
        %v656 = vpop.permute.xlu0 %655
        %657 = vrot.lane.b32.xlu0 %v473, 28
        %v658 = vpop.permute.xlu0 %657
        %659 = vrot.lane.b32.xlu0 %v628, 28
        %v660 = vpop.permute.xlu0 %659
        %661 = vrot.lane.b32.xlu0 %v630, 28
        %v662 = vpop.permute.xlu0 %661
        %v679 = vrot.slane %v213, 2
        %v680 = vrot.slane %v214, 2
        %v681 = vsel %vm329, %v679, %v680
        %v682 = vrot.slane %v215, 2
        %v683 = vsel %vm329, %v680, %v682
        %684 = vrot.lane.b32.xlu0 %v342, 32
        %v685 = vpop.permute.xlu0 %684
        %686 = vrot.lane.b32.xlu0 %v344, 32
        %v687 = vpop.permute.xlu0 %686
        %688 = vrot.lane.b32.xlu0 %v347, 32
        %v689 = vpop.permute.xlu0 %688
        %690 = vrot.lane.b32.xlu0 %v349, 32
        %v691 = vpop.permute.xlu0 %690
        %692 = vrot.lane.b32.xlu0 %v352, 32
        %v693 = vpop.permute.xlu0 %692
        %694 = vrot.lane.b32.xlu0 %v354, 32
        %v695 = vpop.permute.xlu0 %694
        %696 = vrot.lane.b32.xlu0 %v357, 32
        %v697 = vpop.permute.xlu0 %696
        %698 = vrot.lane.b32.xlu0 %v359, 32
        %v699 = vpop.permute.xlu0 %698
        %700 = vrot.lane.b32.xlu0 %v362, 32
        %v701 = vpop.permute.xlu0 %700
        %702 = vrot.lane.b32.xlu0 %v364, 32
        %v703 = vpop.permute.xlu0 %702
        %704 = vrot.lane.b32.xlu0 %v367, 32
        %v705 = vpop.permute.xlu0 %704
        %706 = vrot.lane.b32.xlu0 %v369, 32
        %v707 = vpop.permute.xlu0 %706
        %708 = vrot.lane.b32.xlu0 %v524, 32
        %v709 = vpop.permute.xlu0 %708
        %710 = vrot.lane.b32.xlu0 %v526, 32
        %v711 = vpop.permute.xlu0 %710
        %712 = vrot.lane.b32.xlu0 %v681, 32
        %v713 = vpop.permute.xlu0 %712
        %714 = vrot.lane.b32.xlu0 %v683, 32
        %v715 = vpop.permute.xlu0 %714
        %vm732 = vcmask 31744
        %v733 = vsel %vm732, %v186, %v282
        %v734 = vsel %vm732, %v187, %v284
        %v735 = vsel %vm732, %v189, %v286
        %v736 = vsel %vm732, %v190, %v288
        %v737 = vsel %vm732, %v192, %v290
        %v738 = vsel %vm732, %v193, %v292
        %v739 = vsel %vm732, %v195, %v294
        %v740 = vsel %vm732, %v196, %v296
        %v741 = vsel %vm732, %v198, %v298
        %v742 = vsel %vm732, %v199, %v300
        %v743 = vsel %vm732, %v201, %v302
        %v744 = vsel %vm732, %v202, %v304
        %v745 = vsel %vm732, %v204, %v306
        %v746 = vsel %vm732, %v205, %v308
        %v747 = vsel %vm732, %v207, %v310
        %v748 = vsel %vm732, %v208, %v312
        %vm749 = vcmask 64512
        %v750 = vsel %vm749, %v733, %v371
        %v751 = vsel %vm749, %v734, %v373
        %v752 = vsel %vm749, %v735, %v375
        %v753 = vsel %vm749, %v736, %v377
        %v754 = vsel %vm749, %v737, %v379
        %v755 = vsel %vm749, %v738, %v381
        %v756 = vsel %vm749, %v739, %v383
        %v757 = vsel %vm749, %v740, %v385
        %v758 = vsel %vm749, %v741, %v387
        %v759 = vsel %vm749, %v742, %v389
        %v760 = vsel %vm749, %v743, %v391
        %v761 = vsel %vm749, %v744, %v393
        %v762 = vsel %vm749, %v745, %v395
        %v763 = vsel %vm749, %v746, %v397
        %v764 = vsel %vm749, %v747, %v399
        %v765 = vsel %vm749, %v748, %v401
        %vm766 = vcmask 97280
        %v767 = vsel %vm766, %v750, %v421
        %v768 = vsel %vm766, %v751, %v423
        %v769 = vsel %vm766, %v752, %v425
        %v770 = vsel %vm766, %v753, %v427
        %v771 = vsel %vm766, %v754, %v429
        %v772 = vsel %vm766, %v755, %v431
        %v773 = vsel %vm766, %v756, %v433
        %v774 = vsel %vm766, %v757, %v435
        %v775 = vsel %vm766, %v758, %v437
        %v776 = vsel %vm766, %v759, %v439
        %v777 = vsel %vm766, %v760, %v441
        %v778 = vsel %vm766, %v761, %v443
        %v779 = vsel %vm766, %v762, %v445
        %v780 = vsel %vm766, %v763, %v447
        %v781 = vsel %vm766, %v764, %v449
        %v782 = vsel %vm766, %v765, %v451
        %vm783 = vcmask 130048
        %v784 = vsel %vm783, %v767, %v475
        %v785 = vsel %vm783, %v768, %v477
        %v786 = vsel %vm783, %v769, %v479
        %v787 = vsel %vm783, %v770, %v481
        %v788 = vsel %vm783, %v771, %v483
        %v789 = vsel %vm783, %v772, %v485
        %v790 = vsel %vm783, %v773, %v487
        %v791 = vsel %vm783, %v774, %v489
        %v792 = vsel %vm783, %v775, %v491
        %v793 = vsel %vm783, %v776, %v493
        %v794 = vsel %vm783, %v777, %v495
        %v795 = vsel %vm783, %v778, %v497
        %v796 = vsel %vm783, %v779, %v499
        %v797 = vsel %vm783, %v780, %v501
        %v798 = vsel %vm783, %v781, %v503
        %v799 = vsel %vm783, %v782, %v505
        %vm800 = vcmask 162816
        %v801 = vsel %vm800, %v784, %v528
        %v802 = vsel %vm800, %v785, %v530
        %v803 = vsel %vm800, %v786, %v532
        %v804 = vsel %vm800, %v787, %v534
        %v805 = vsel %vm800, %v788, %v536
        %v806 = vsel %vm800, %v789, %v538
        %v807 = vsel %vm800, %v790, %v540
        %v808 = vsel %vm800, %v791, %v542
        %v809 = vsel %vm800, %v792, %v544
        %v810 = vsel %vm800, %v793, %v546
        %v811 = vsel %vm800, %v794, %v548
        %v812 = vsel %vm800, %v795, %v550
        %v813 = vsel %vm800, %v796, %v552
        %v814 = vsel %vm800, %v797, %v554
        %v815 = vsel %vm800, %v798, %v556
        %v816 = vsel %vm800, %v799, %v558
        %vm817 = vcmask 195584
        %v818 = vsel %vm817, %v801, %v578
        %v819 = vsel %vm817, %v802, %v580
        %v820 = vsel %vm817, %v803, %v582
        %v821 = vsel %vm817, %v804, %v584
        %v822 = vsel %vm817, %v805, %v586
        %v823 = vsel %vm817, %v806, %v588
        %v824 = vsel %vm817, %v807, %v590
        %v825 = vsel %vm817, %v808, %v592
        %v826 = vsel %vm817, %v809, %v594
        %v827 = vsel %vm817, %v810, %v596
        %v828 = vsel %vm817, %v811, %v598
        %v829 = vsel %vm817, %v812, %v600
        %v830 = vsel %vm817, %v813, %v602
        %v831 = vsel %vm817, %v814, %v604
        %v832 = vsel %vm817, %v815, %v606
        %v833 = vsel %vm817, %v816, %v608
        %vm834 = vcmask 228352
        %v835 = vsel %vm834, %v818, %v632
        %v836 = vsel %vm834, %v819, %v634
        %v837 = vsel %vm834, %v820, %v636
        %v838 = vsel %vm834, %v821, %v638
        %v839 = vsel %vm834, %v822, %v640
        %v840 = vsel %vm834, %v823, %v642
        %v841 = vsel %vm834, %v824, %v644
        %v842 = vsel %vm834, %v825, %v646
        %v843 = vsel %vm834, %v826, %v648
        %v844 = vsel %vm834, %v827, %v650
        %v845 = vsel %vm834, %v828, %v652
        %v846 = vsel %vm834, %v829, %v654
        %v847 = vsel %vm834, %v830, %v656
        %v848 = vsel %vm834, %v831, %v658
        %v849 = vsel %vm834, %v832, %v660
        %v850 = vsel %vm834, %v833, %v662
        %vm851 = vcmask 261120
        %v852 = vsel %vm851, %v835, %v685
        %v853 = vsel %vm851, %v836, %v687
        %v854 = vsel %vm851, %v837, %v689
        %v855 = vsel %vm851, %v838, %v691
        %v856 = vsel %vm851, %v839, %v693
        %v857 = vsel %vm851, %v840, %v695
        %v858 = vsel %vm851, %v841, %v697
        %v859 = vsel %vm851, %v842, %v699
        %v860 = vsel %vm851, %v843, %v701
        %v861 = vsel %vm851, %v844, %v703
        %v862 = vsel %vm851, %v845, %v705
        %v863 = vsel %vm851, %v846, %v707
        %v864 = vsel %vm851, %v847, %v709
        %v865 = vsel %vm851, %v848, %v711
        %v866 = vsel %vm851, %v849, %v713
        %v867 = vsel %vm851, %v850, %v715
        %v868 = vld [vmem:[%s1] sm:$0xff]
        %v869 = vld [vmem:[%s2] sm:$0xff]
        %871 = vset.pattern.permute.xlu0 0
        %872 = vperm.xlu0 %871, %v869
        %v873 = vpop.permute.xlu0 %872
        %vm875 = vcmask 293888
        %v877 = vsel %vm875, %v868, 0
        %v880 = vsel %vm875, %v852, 0
        %v883 = vsel %vm875, %v853, 0
        %v886 = vsel %vm875, %v854, 0
        %v889 = vsel %vm875, %v855, 0
        %v892 = vsel %vm875, %v856, 0
        %v895 = vsel %vm875, %v857, 0
        %v898 = vsel %vm875, %v858, 0
        %v901 = vsel %vm875, %v859, 0
        %v904 = vsel %vm875, %v860, 0
        %v907 = vsel %vm875, %v861, 0
        %v910 = vsel %vm875, %v862, 0
        %v913 = vsel %vm875, %v863, 0
        %v916 = vsel %vm875, %v864, 0
        %v919 = vsel %vm875, %v865, 0
        %v922 = vsel %vm875, %v866, 0
        %v925 = vsel %vm875, %v867, 0
        %927 = vmatprep.subr.mxu0 0.0
        %928 = vmatpush1.xpose.msra.mxu0 %v925
        %929 = vmatprep.subr.mxu0 0.0
        %930 = vmatpush1.xpose.msra.mxu0 %v922
        %931 = vmatprep.subr.mxu0 0.0
        %932 = vmatpush1.xpose.msra.mxu0 %v919
        %933 = vmatprep.subr.mxu0 0.0
        %934 = vmatpush1.xpose.msra.mxu0 %v916
        %935 = vmatprep.subr.mxu0 0.0
        %936 = vmatpush1.xpose.msra.mxu0 %v913
        %937 = vmatprep.subr.mxu0 0.0
        %938 = vmatpush1.xpose.msra.mxu0 %v910
        %939 = vmatprep.subr.mxu0 0.0
        %940 = vmatpush1.xpose.msra.mxu0 %v907
        %941 = vmatprep.subr.mxu0 0.0
        %942 = vmatpush1.xpose.msra.mxu0 %v904
        %943 = vmatprep.subr.mxu0 0.0
        %944 = vmatpush1.xpose.msra.mxu0 %v901
        %945 = vmatprep.subr.mxu0 0.0
        %946 = vmatpush1.xpose.msra.mxu0 %v898
        %947 = vmatprep.subr.mxu0 0.0
        %948 = vmatpush1.xpose.msra.mxu0 %v895
        %949 = vmatprep.subr.mxu0 0.0
        %950 = vmatpush1.xpose.msra.mxu0 %v892
        %951 = vmatprep.subr.mxu0 0.0
        %952 = vmatpush1.xpose.msra.mxu0 %v889
        %953 = vmatprep.subr.mxu0 0.0
        %954 = vmatpush1.xpose.msra.mxu0 %v886
        %955 = vmatprep.subr.mxu0 0.0
        %956 = vmatpush1.xpose.msra.mxu0 %v883
        %957 = vmatprep.subr.mxu0 0.0
        %958 = vmatpush1.xpose.msra.mxu0 %v880
        %959 = vmatprep.subr.mxu0 0.0
        %960 = vmatpush2.xpose.msra.mxu0 0.0
        %961 = vmatprep.subr.mxu0 0.0
        %962 = vmatpush2.xpose.msra.mxu0 0.0
        %963 = vmatprep.subr.mxu0 0.0
        %964 = vmatpush2.xpose.msra.mxu0 0.0
        %965 = vmatprep.subr.mxu0 0.0
        %966 = vmatpush2.xpose.msra.mxu0 0.0
        %967 = vmatprep.subr.mxu0 0.0
        %968 = vmatpush2.xpose.msra.mxu0 0.0
        %969 = vmatprep.subr.mxu0 0.0
        %970 = vmatpush2.xpose.msra.mxu0 0.0
        %971 = vmatprep.subr.mxu0 0.0
        %972 = vmatpush2.xpose.msra.mxu0 0.0
        %973 = vmatprep.subr.mxu0 0.0
        %974 = vmatpush2.xpose.msra.mxu0 0.0
        %975 = vmatprep.subr.mxu0 0.0
        %976 = vmatpush2.xpose.msra.mxu0 0.0
        %977 = vmatprep.subr.mxu0 0.0
        %978 = vmatpush2.xpose.msra.mxu0 0.0
        %979 = vmatprep.subr.mxu0 0.0
        %980 = vmatpush2.xpose.msra.mxu0 0.0
        %981 = vmatprep.subr.mxu0 0.0
        %982 = vmatpush2.xpose.msra.mxu0 0.0
        %983 = vmatprep.subr.mxu0 0.0
        %984 = vmatpush2.xpose.msra.mxu0 0.0
        %985 = vmatprep.subr.mxu0 0.0
        %986 = vmatpush2.xpose.msra.mxu0 0.0
        %987 = vmatprep.subr.mxu0 0.0
        %988 = vmatpush2.xpose.msra.mxu0 0.0
        %989 = vmatprep.subr.mxu0 0.0
        %990 = vmatpush2.xpose.msra.mxu0 0.0
        %991 = vmatprep.mubr.f32.mxu0 0.0
        %992 = vmatmul.mubr.f32.gmra.mxu0 %v877
        %v993 = vpop.f32.mrf.mxu0
        %v994 = vadd.f32 %v873, %v993
        %v995 = vpop.f32.mrf.mxu0
        %996 = vdwg.mxu0
        %997 = vst [vmem:[%s177] sm:$0xff] %v994
        %s998 = sand.u32 %s107, 1
        %s999 = scalar_lea.sflag [#allocation3], %s998
        %s1000 = sand.u32 %s107, 1
        %s1001 = smul.addr %s1000, 8
        %s1002 = scalar_lea.vmem [#allocation2], %s1001
        // Predicated region
        $region33: #{tpu_custom_call.1} parent=31 // pred_check
          %p1003 = pneg %p117
        $region34: #{tpu_custom_call.1} parent=31 // pred_check_branch
          %1005 = sbr.rel (%p1003) target = $region36
        $region35: #{tpu_custom_call.1} parent=31 // pred_region
          %s1007 = ssub.s32 128, 128
          %1008 = vsyncadd %s999, %s1007
          %s1009 = smul.addr %s21, 2
          %s1010 = sadd.s32 %s22, %s1009
          %s1011 = smul.addr %s1010, 128
          %s1012 = scalar_lea.hbm %s3, %s1011
          %s1014 = sshll.u32 %s1002, 4
          %s1015 = int_to_ptr.vmem [resolvable:$true] %s1014
          %1017 = dma.vmem_to_hbm [thread:$0]  %s1015, 128, %s1012, %s999
        $region36: #{tpu_custom_call.1} parent=31 // pred_fallthru
          _
      $region32: #{tpu_custom_call.1} parent=5 // pred_fallthru
        _
      %p1018 = scmp.le.s32.totalorder 2, %s12
      // Predicated region
      $region37: #{tpu_custom_call.1} parent=5 // pred_check
        %p1019 = pneg %p1018
      $region38: #{tpu_custom_call.1} parent=5 // pred_check_branch
        %1021 = sbr.rel (%p1019) target = $region40
      $region39: #{tpu_custom_call.1} parent=5 // pred_region
        %s1022 = ssub.s32 %s12, 2
        // Predicated region
        $region41: #{tpu_custom_call.1} parent=39 // pred_check
          %p1023 = pneg %p123
        $region42: #{tpu_custom_call.1} parent=39 // pred_check_branch
          %1025 = sbr.rel (%p1023) target = $region44
        $region43: #{tpu_custom_call.1} parent=39 // pred_region
          %s1026 = sand.u32 %s108, 1
          %s1027 = scalar_lea.sflag [#allocation3], %s1026
          %s1028 = sand.u32 %s108, 1
          %s1029 = smul.addr %s1028, 8
          %s1030 = scalar_lea.vmem [#allocation2], %s1029
          %1031 = dma.done %s1027, 128
        $region44: #{tpu_custom_call.1} parent=39 // pred_fallthru
          _
      $region40: #{tpu_custom_call.1} parent=5 // pred_fallthru
        _
    $region6: #{tpu_custom_call.1} parent=1 // loop_footer
      %s16 = sadd.s32 1, %s12
    $region7: #{tpu_custom_call.1} parent=1 // loop_footer_branch
      %11 = sbr.rel target = $region3
    $region8: #{tpu_custom_call.1} parent=1 // loop_exit
      _
    %1032 = vsyncpa [#allocation3], 1
    %s1033 = scalar_lea.sflag [#allocation3], 1
    %1034 = vsyncpa %s1033, 1

</llo_original>
